<compile_context>
chip_gen: v5e
topology: v5e:2x2
jax: 0.10.0
libtpu: 0.0.40
codegen_flags: <defaults>
</compile_context>

<pallas_src>
import functools

import jax
import jax.numpy as jnp
import numpy as np
from jax.experimental import pallas as pl
from jax.experimental.pallas import tpu as pltpu


def _round_up(x, m):
    return ((x + m - 1) // m) * m


# ----------------------------------------------------------------------------
# Pallas kernel: fused (patch-tile @ W + b) followed by LayerNorm over D.
# ----------------------------------------------------------------------------
def _patch_embed_kernel(p_ref, w_ref, b_ref, g_ref, beta_ref, o_ref, *, eps):
    # p_ref:    (TM, K)  bf16 im2col patch tile (streamed)
    # w_ref:    (K, D)   bf16 matmul weight    (resident)
    # b_ref:    (1, D)   f32 conv bias
    # g_ref:    (1, D)   f32 LayerNorm gamma
    # beta_ref: (1, D)   f32 LayerNorm beta
    # o_ref:    (TM, D)  f32 output tile
    y = jnp.dot(p_ref[...], w_ref[...], preferred_element_type=jnp.float32)
    y = y + b_ref[...]

    # LayerNorm over embed_dim (population variance, eps inside rsqrt) — f32.
    mean = jnp.mean(y, axis=-1, keepdims=True)
    centered = y - mean
    var = jnp.mean(centered * centered, axis=-1, keepdims=True)
    xhat = centered * jax.lax.rsqrt(var + eps)
    o_ref[...] = (xhat * g_ref[...] + beta_ref[...]).astype(o_ref.dtype)


def patch_embed_pallas(x, weight, bias, gamma, beta, *, patch_size, stride,
                       eps=1e-5, tile_m=512):
    """Forward of PatchEmbed.

    x:      (B, C, H, W)  NCHW, as in PyTorch.
    weight: (embed_dim, C, k, k) conv weight (torch OIHW layout).
    bias:   (embed_dim,)
    gamma, beta: (embed_dim,) LayerNorm affine params.
    Returns (out, H_out, W_out) with out: (B, H_out*W_out, embed_dim) f32.
    """
    B, C, H, W = x.shape
    D = weight.shape[0]
    k = patch_size
    pad = patch_size // 2

    H_out = (H + 2 * pad - k) // stride + 1
    W_out = (W + 2 * pad - k) // stride + 1
    N = H_out * W_out
    M = B * N
    K = C * k * k

    # --- im2col: one conv HLO.  Output feature ordering is (c, kh, kw) with c
    # major, which matches torch's weight.reshape(D, C*k*k) flatten order.
    # bf16 input -> bf16 patches (identity conv is value-exact), halving the
    # HBM bytes of the expanded patch matrix (the dominant stream).
    patches = jax.lax.conv_general_dilated_patches(
        x.astype(jnp.bfloat16),
        filter_shape=(k, k),
        window_strides=(stride, stride),
        padding=((pad, pad), (pad, pad)),
        dimension_numbers=("NCHW", "OIHW", "NHWC"))     # -> (B, Ho, Wo, K)
    patches = patches.reshape(M, K).astype(jnp.bfloat16)

    # --- tile over M; pad M so every grid step is a full tile (padded rows
    # are zeros -> finite LayerNorm output, sliced off afterwards).
    TM = min(tile_m, _round_up(M, 8))
    M_pad = _round_up(M, TM)
    if M_pad != M:
        patches = jnp.pad(patches, ((0, M_pad - M), (0, 0)))
    n_tiles = M_pad // TM

    # Conv weight (D, C, k, k) -> matmul weight (K, D); same (c,kh,kw) order.
    w_mat = weight.reshape(D, K).T.astype(jnp.bfloat16)
    b_row = bias.reshape(1, D).astype(jnp.float32)
    g_row = gamma.reshape(1, D).astype(jnp.float32)
    beta_row = beta.reshape(1, D).astype(jnp.float32)

    kernel = functools.partial(_patch_embed_kernel, eps=eps)

    cost = pl.CostEstimate(
        flops=2 * M_pad * K * D,
        transcendentals=0,
        bytes_accessed=(M_pad * K * 2        # bf16 patches in
                        + K * D * 2          # bf16 weight in
                        + M_pad * D * 4      # f32 out
                        + 3 * D * 4))        # bias/gamma/beta

    # TODO(synk): for embed_dim < 128 (lane width) the output store is a
    # masked vst; the module default embed_dim=768 is lane-dense, so no
    # repacking/padding of D is done here.
    out_flat = pl.pallas_call(
        kernel,
        out_shape=jax.ShapeDtypeStruct((M_pad, D), jnp.float32),
        grid_spec=pl.GridSpec(
            grid=(n_tiles,),
            in_specs=[
                pl.BlockSpec((TM, K), lambda i: (i, 0)),   # streamed per tile
                pl.BlockSpec((K, D), lambda i: (0, 0)),    # resident
                pl.BlockSpec((1, D), lambda i: (0, 0)),    # resident
                pl.BlockSpec((1, D), lambda i: (0, 0)),    # resident
                pl.BlockSpec((1, D), lambda i: (0, 0)),    # resident
            ],
            out_specs=pl.BlockSpec((TM, D), lambda i: (i, 0)),
        ),
        compiler_params=pltpu.CompilerParams(
            dimension_semantics=("parallel",),
            vmem_limit_bytes=32 * 1024 * 1024),
        cost_estimate=cost,
    )(patches, w_mat, b_row, g_row, beta_row)

    out = out_flat[:M].reshape(B, N, D)
    return out, H_out, W_out


# ----------------------------------------------------------------------------
# Pure-JAX f32 reference (for correctness check only).
# ----------------------------------------------------------------------------
def patch_embed_ref(x, weight, bias, gamma, beta, *, patch_size, stride,
                    eps=1e-5):
    pad = patch_size // 2
    y = jax.lax.conv_general_dilated(
        x.astype(jnp.float32), weight.astype(jnp.float32),
        window_strides=(stride, stride),
        padding=((pad, pad), (pad, pad)),
        dimension_numbers=("NCHW", "OIHW", "NCHW"))
    y = y + bias.reshape(1, -1, 1, 1)
    B, D, Ho, Wo = y.shape
    y = y.reshape(B, D, Ho * Wo).transpose(0, 2, 1)   # (B, N, D)
    mean = jnp.mean(y, axis=-1, keepdims=True)
    var = jnp.mean((y - mean) ** 2, axis=-1, keepdims=True)
    y = (y - mean) * jax.lax.rsqrt(var + eps)
    y = y * gamma.reshape(1, 1, -1) + beta.reshape(1, 1, -1)
    return y, Ho, Wo


if __name__ == "__main__":
    # Small shapes consistent with the module: batch=2, in_chans=4, img=16,
    # patch_size=7, stride=4, embed_dim=32.
    B, C, HW = 2, 4, 16
    patch_size, stride, embed_dim = 7, 4, 32

    key = jax.random.PRNGKey(0)
    kx, kw, kb, kg, kbeta = jax.random.split(key, 5)

    x = jax.random.normal(kx, (B, C, HW, HW), dtype=jnp.float32)
    fan_in = C * patch_size * patch_size
    weight = jax.random.normal(kw, (embed_dim, C, patch_size, patch_size),
                               dtype=jnp.float32) / np.sqrt(fan_in)
    bias = jax.random.normal(kb, (embed_dim,), dtype=jnp.float32) * 0.1
    gamma = 1.0 + 0.1 * jax.random.normal(kg, (embed_dim,), dtype=jnp.float32)
    beta = 0.1 * jax.random.normal(kbeta, (embed_dim,), dtype=jnp.float32)

    out, H_out, W_out = patch_embed_pallas(
        x, weight, bias, gamma, beta, patch_size=patch_size, stride=stride)
    out = jax.block_until_ready(out)

    ref, Hr, Wr = patch_embed_ref(
        x, weight, bias, gamma, beta, patch_size=patch_size, stride=stride)
    ref = jax.block_until_ready(ref)

    assert (H_out, W_out) == (Hr, Wr)
    assert out.shape == (B, H_out * W_out, embed_dim)
    # Tolerance accounts for bf16 matmul inputs (f32 accumulation) vs the
    # f32 reference; post-LayerNorm values are O(1), so 5e-2 still catches any
    # ordering/layout bug (which would produce O(1) errors).
    np.testing.assert_allclose(np.asarray(out), np.asarray(ref),
                               rtol=5e-2, atol=5e-2)

    print("KERNEL_OK")
</pallas_src>

<mosaic_0001>
module attributes {stable_mosaic.version = 11 : i64} {
  func.func @_patch_embed_kernel(%arg0: i32, %arg1: memref<32x196xbf16, #tpu.memory_space<vmem>>, %arg2: memref<196x32xbf16, #tpu.memory_space<vmem>>, %arg3: memref<1x32xf32, #tpu.memory_space<vmem>>, %arg4: memref<1x32xf32, #tpu.memory_space<vmem>>, %arg5: memref<1x32xf32, #tpu.memory_space<vmem>>, %arg6: memref<32x32xf32, #tpu.memory_space<vmem>>) attributes {dimension_semantics = [#tpu.dimension_semantics<parallel>], iteration_bounds = array<i64: 1>, scalar_prefetch = 0 : i64, scratch_operands = 0 : i64, tpu.core_type = #tpu.core_type<tc>, window_params = [{transform_indices = @transform_0, window_bounds = array<i64: 32, 196>}, {pipeline_mode = #tpu.pipeline_mode<synchronous>, transform_indices = @transform_1, window_bounds = array<i64: 196, 32>}, {pipeline_mode = #tpu.pipeline_mode<synchronous>, transform_indices = @transform_2, window_bounds = array<i64: 1, 32>}, {pipeline_mode = #tpu.pipeline_mode<synchronous>, transform_indices = @transform_3, window_bounds = array<i64: 1, 32>}, {pipeline_mode = #tpu.pipeline_mode<synchronous>, transform_indices = @transform_4, window_bounds = array<i64: 1, 32>}, {transform_indices = @transform_5, window_bounds = array<i64: 32, 32>}]} {
    %c0 = arith.constant 0 : index
    %c0_0 = arith.constant 0 : index
    %0 = vector.load %arg1[%c0, %c0_0] : memref<32x196xbf16, #tpu.memory_space<vmem>>, vector<32x196xbf16>
    %c0_1 = arith.constant 0 : index
    %c0_2 = arith.constant 0 : index
    %1 = vector.load %arg2[%c0_1, %c0_2] : memref<196x32xbf16, #tpu.memory_space<vmem>>, vector<196x32xbf16>
    %cst = arith.constant dense<0.000000e+00> : vector<32x32xf32>
    %2 = tpu.matmul %0, %1, %cst {dimension_numbers = #tpu.dot_dimension_numbers<[1], [0], [0], [1], [0, 0, 1, 1], [], []>} : vector<32x196xbf16>, vector<196x32xbf16>, vector<32x32xf32> -> vector<32x32xf32>
    %c0_3 = arith.constant 0 : index
    %c0_4 = arith.constant 0 : index
    %3 = vector.load %arg3[%c0_3, %c0_4] : memref<1x32xf32, #tpu.memory_space<vmem>>, vector<1x32xf32>
    %4 = vector.broadcast %3 : vector<1x32xf32> to vector<32x32xf32>
    %5 = arith.addf %2, %4 : vector<32x32xf32>
    %cst_5 = arith.constant dense<0.000000e+00> : vector<32xf32>
    %6 = vector.multi_reduction <add>, %5, %cst_5 [1] : vector<32x32xf32> to vector<32xf32>
    %7 = vector.shape_cast %6 : vector<32xf32> to vector<32x1xf32>
    %cst_6 = arith.constant 3.200000e+01 : f32
    %8 = vector.broadcast %cst_6 : f32 to vector<32x1xf32>
    %9 = arith.divf %7, %8 : vector<32x1xf32>
    %10 = vector.broadcast %9 : vector<32x1xf32> to vector<32x32xf32>
    %11 = arith.subf %5, %10 : vector<32x32xf32>
    %12 = arith.mulf %11, %11 : vector<32x32xf32>
    %cst_7 = arith.constant dense<0.000000e+00> : vector<32xf32>
    %13 = vector.multi_reduction <add>, %12, %cst_7 [1] : vector<32x32xf32> to vector<32xf32>
    %14 = vector.shape_cast %13 : vector<32xf32> to vector<32x1xf32>
    %cst_8 = arith.constant 3.200000e+01 : f32
    %15 = vector.broadcast %cst_8 : f32 to vector<32x1xf32>
    %16 = arith.divf %14, %15 : vector<32x1xf32>
    %cst_9 = arith.constant 9.99999974E-6 : f32
    %17 = vector.broadcast %cst_9 : f32 to vector<32x1xf32>
    %18 = arith.addf %16, %17 : vector<32x1xf32>
    %19 = math.rsqrt %18 : vector<32x1xf32>
    %20 = vector.broadcast %19 : vector<32x1xf32> to vector<32x32xf32>
    %21 = arith.mulf %11, %20 : vector<32x32xf32>
    %c0_10 = arith.constant 0 : index
    %c0_11 = arith.constant 0 : index
    %22 = vector.load %arg4[%c0_10, %c0_11] : memref<1x32xf32, #tpu.memory_space<vmem>>, vector<1x32xf32>
    %23 = vector.broadcast %22 : vector<1x32xf32> to vector<32x32xf32>
    %24 = arith.mulf %21, %23 : vector<32x32xf32>
    %c0_12 = arith.constant 0 : index
    %c0_13 = arith.constant 0 : index
    %25 = vector.load %arg5[%c0_12, %c0_13] : memref<1x32xf32, #tpu.memory_space<vmem>>, vector<1x32xf32>
    %26 = vector.broadcast %25 : vector<1x32xf32> to vector<32x32xf32>
    %27 = arith.addf %24, %26 : vector<32x32xf32>
    %c0_14 = arith.constant 0 : index
    %c0_15 = arith.constant 0 : index
    %28 = vector.load %arg6[%c0_14, %c0_15] : memref<32x32xf32, #tpu.memory_space<vmem>>, vector<32x32xf32>
    tpu.vector_store %arg6[%c0_14, %c0_15], %27 {strides = array<i32>} : memref<32x32xf32, #tpu.memory_space<vmem>>, vector<32x32xf32>,
    return
  }
  func.func @transform_0(%arg0: i32) -> (i32, i32) {
    %c0_i32 = arith.constant 0 : i32
    %c0_i32_0 = arith.constant 0 : i32
    return %arg0, %c0_i32 : i32, i32
  }
  func.func @transform_1(%arg0: i32) -> (i32, i32) {
    %c0_i32 = arith.constant 0 : i32
    %c0_i32_0 = arith.constant 0 : i32
    %c0_i32_1 = arith.constant 0 : i32
    return %c0_i32, %c0_i32_0 : i32, i32
  }
  func.func @transform_2(%arg0: i32) -> (i32, i32) {
    %c0_i32 = arith.constant 0 : i32
    %c0_i32_0 = arith.constant 0 : i32
    %c0_i32_1 = arith.constant 0 : i32
    return %c0_i32, %c0_i32_0 : i32, i32
  }
  func.func @transform_3(%arg0: i32) -> (i32, i32) {
    %c0_i32 = arith.constant 0 : i32
    %c0_i32_0 = arith.constant 0 : i32
    %c0_i32_1 = arith.constant 0 : i32
    return %c0_i32, %c0_i32_0 : i32, i32
  }
  func.func @transform_4(%arg0: i32) -> (i32, i32) {
    %c0_i32 = arith.constant 0 : i32
    %c0_i32_0 = arith.constant 0 : i32
    %c0_i32_1 = arith.constant 0 : i32
    return %c0_i32, %c0_i32_0 : i32, i32
  }
  func.func @transform_5(%arg0: i32) -> (i32, i32) {
    %c0_i32 = arith.constant 0 : i32
    %c0_i32_0 = arith.constant 0 : i32
    return %arg0, %c0_i32 : i32, i32
  }
}

</mosaic_0001>

<llo_original>
// kernel: tpu_custom_call.1
$region0: #{tpu_custom_call.1}
  #allocation0 [shape = 'u32[]', space=smem, size = 0x4, offset = 0x4, fixed_abs, tag = 'smem constant byte address 0x4 - core index']
  #allocation1 [shape = 'u32[72,128]{1,0:T(1,128)}', space=vmem, size = 0x9000, scoped, tag = 'internal scratch']
  %s0 = inlined_call_operand.vmem [shape: bf16[32,196], index: 0, kind: input, shape index: {}]
  %s1 = inlined_call_operand.vmem [shape: bf16[196,32], index: 1, kind: input, shape index: {}]
  %s2 = inlined_call_operand.vmem [shape: f32[1,32], index: 2, kind: input, shape index: {}]
  %s3 = inlined_call_operand.vmem [shape: f32[1,32], index: 3, kind: input, shape index: {}]
  %s4 = inlined_call_operand.vmem [shape: f32[1,32], index: 4, kind: input, shape index: {}]
  %s5 = inlined_call_operand.hbm [shape: f32[32,32], index: 5, kind: output, shape index: {}]
  %s6 = sld [smem:[#allocation0]]
  $region30: #{tpu_custom_call.1} parent=0
    _
  %s8 = ssub.s32 1, %s6
  %s9 = scalar_select 0, %s8, %s6
  $region1: #{tpu_custom_call.1} parent=0
    #allocation2 [shape = 'u8[16384]{0}', space=vmem, size = 0x4000, scoped, tag = 'output window, operand 0, single buffered']
    #allocation3 [shape = 's32[1]{0}', space=sflag, size = 0x4, scoped, tag = 'scoped memory for tpu_custom_call.1']
    %10 = vsyncpa [#allocation3], 0
    // Predicated region
    $region2: #{tpu_custom_call.1} parent=1 // pred_check
      _
    $region3: #{tpu_custom_call.1} parent=1 // pred_check_branch
      %12 = sbr.rel (0) target = $region5
    $region4: #{tpu_custom_call.1} parent=1 // pred_region
      _
    $region5: #{tpu_custom_call.1} parent=1 // pred_fallthru
      _
    // Predicated region
    $region6: #{tpu_custom_call.1} parent=1 // pred_check
      _
    $region7: #{tpu_custom_call.1} parent=1 // pred_check_branch
      %14 = sbr.rel (0) target = $region9
    $region8: #{tpu_custom_call.1} parent=1 // pred_region
      _
    $region9: #{tpu_custom_call.1} parent=1 // pred_fallthru
      _
    // Predicated region
    $region10: #{tpu_custom_call.1} parent=1 // pred_check
      _
    $region11: #{tpu_custom_call.1} parent=1 // pred_check_branch
      %16 = sbr.rel (0) target = $region13
    $region12: #{tpu_custom_call.1} parent=1 // pred_region
      _
    $region13: #{tpu_custom_call.1} parent=1 // pred_fallthru
      _
    // Predicated region
    $region14: #{tpu_custom_call.1} parent=1 // pred_check
      _
    $region15: #{tpu_custom_call.1} parent=1 // pred_check_branch
      %18 = sbr.rel (0) target = $region17
    $region16: #{tpu_custom_call.1} parent=1 // pred_region
      _
    $region17: #{tpu_custom_call.1} parent=1 // pred_fallthru
      _
    // Predicated region
    $region18: #{tpu_custom_call.1} parent=1 // pred_check
      _
    $region19: #{tpu_custom_call.1} parent=1 // pred_check_branch
      %20 = sbr.rel (0) target = $region21
    $region20: #{tpu_custom_call.1} parent=1 // pred_region
      _
    $region21: #{tpu_custom_call.1} parent=1 // pred_fallthru
      _
    %v22 = vld [vmem:[%s0] sm:$0xff]
    %v23 = vld [vmem:[%s0 + $0x8] sm:$0xff]
    %v24 = vld [vmem:[%s0 + $0x10] sm:$0xff]
    %v25 = vld [vmem:[%s0 + $0x18] sm:$0xff]
    %v26 = vld [vmem:[%s1] sm:$0xf]
    %v27 = vld [vmem:[%s1 + $0x4] sm:$0xf]
    %v28 = vld [vmem:[%s1 + $0x8] sm:$0xf]
    %v29 = vld [vmem:[%s1 + $0xc] sm:$0xf]
    %v30 = vld [vmem:[%s1 + $0x10] sm:$0xf]
    %v31 = vld [vmem:[%s1 + $0x14] sm:$0xf]
    %v32 = vld [vmem:[%s1 + $0x18] sm:$0xf]
    %v33 = vld [vmem:[%s1 + $0x1c] sm:$0xf]
    %v34 = vld [vmem:[%s1 + $0x20] sm:$0xf]
    %v35 = vld [vmem:[%s1 + $0x24] sm:$0xf]
    %v36 = vld [vmem:[%s1 + $0x28] sm:$0xf]
    %v37 = vld [vmem:[%s1 + $0x2c] sm:$0xf]
    %v38 = vld [vmem:[%s1 + $0x30] sm:$0xf]
    %v39 = vld [vmem:[%s1 + $0x34] sm:$0xf]
    %v40 = vld [vmem:[%s1 + $0x38] sm:$0xf]
    %v41 = vld [vmem:[%s1 + $0x3c] sm:$0xf]
    %v42 = vld [vmem:[%s1 + $0x40] sm:$0xf]
    %v43 = vld [vmem:[%s1 + $0x44] sm:$0xf]
    %v44 = vld [vmem:[%s1 + $0x48] sm:$0xf]
    %v45 = vld [vmem:[%s1 + $0x4c] sm:$0xf]
    %v46 = vld [vmem:[%s1 + $0x50] sm:$0xf]
    %v47 = vld [vmem:[%s1 + $0x54] sm:$0xf]
    %v48 = vld [vmem:[%s1 + $0x58] sm:$0xf]
    %v49 = vld [vmem:[%s1 + $0x5c] sm:$0xf]
    %v50 = vld [vmem:[%s1 + $0x60] sm:$0x3]
    %v51 = vld [vmem:[%s2] sm:$0x1]
    %v53 = vperm.slane %v51, 0
    %v59 = vunpack.c.l.b16 %v22
    %v60 = vunpack.c.h.b16 %v22
    %v61 = vunpack.c.l.b16 %v23
    %v62 = vunpack.c.h.b16 %v23
    %v63 = vunpack.c.l.b16 %v24
    %v64 = vunpack.c.h.b16 %v24
    %v65 = vunpack.c.l.b16 %v25
    %v66 = vunpack.c.h.b16 %v25
    %v67 = vpack.c.b16 %v61, %v59
    %v68 = vpack.c.b16 %v62, %v60
    %v69 = vpack.c.b16 %v65, %v63
    %v70 = vpack.c.b16 %v66, %v64
    %v98 = vunpack.c.l.b16 %v26
    %v99 = vunpack.c.l.b16 %v27
    %v100 = vunpack.c.l.b16 %v28
    %v101 = vunpack.c.l.b16 %v29
    %v102 = vunpack.c.l.b16 %v30
    %v103 = vunpack.c.l.b16 %v31
    %v104 = vunpack.c.l.b16 %v32
    %v105 = vunpack.c.l.b16 %v33
    %v106 = vunpack.c.l.b16 %v34
    %v107 = vunpack.c.l.b16 %v35
    %v108 = vunpack.c.l.b16 %v36
    %v109 = vunpack.c.l.b16 %v37
    %v110 = vunpack.c.l.b16 %v38
    %v111 = vunpack.c.l.b16 %v39
    %v112 = vunpack.c.l.b16 %v40
    %v113 = vunpack.c.l.b16 %v41
    %v114 = vunpack.c.l.b16 %v42
    %v115 = vunpack.c.l.b16 %v43
    %v116 = vunpack.c.l.b16 %v44
    %v117 = vunpack.c.l.b16 %v45
    %v118 = vunpack.c.l.b16 %v46
    %v119 = vunpack.c.l.b16 %v47
    %v120 = vunpack.c.l.b16 %v48
    %v121 = vunpack.c.l.b16 %v49
    %v122 = vunpack.c.l.b16 %v50
    %v123 = vpack.c.b16 %v99, %v98
    %v124 = vpack.c.b16 %v101, %v100
    %v125 = vpack.c.b16 %v103, %v102
    %v126 = vpack.c.b16 %v105, %v104
    %v127 = vpack.c.b16 %v107, %v106
    %v128 = vpack.c.b16 %v109, %v108
    %v129 = vpack.c.b16 %v111, %v110
    %v130 = vpack.c.b16 %v113, %v112
    %v131 = vpack.c.b16 %v115, %v114
    %v132 = vpack.c.b16 %v117, %v116
    %v133 = vpack.c.b16 %v119, %v118
    %v134 = vpack.c.b16 %v121, %v120
    %v135 = vpack.c.b16 %v122, %v122
    %vm148 = vcmask 556032
    %v150 = vsel %vm148, %v68, 0
    %v153 = vsel %vm148, %v70, 0
    %vm155 = vcmask 1041408
    %v157 = vsel %vm155, %v135, 0
    %159 = vmatpush.bf16.msra.mxu0 %v130
    %160 = vmatpush.bf16.msra.mxu0 %v129
    %161 = vmatpush.bf16.msra.mxu0 %v128
    %162 = vmatpush.bf16.msra.mxu0 %v127
    %163 = vmatpush.bf16.msra.mxu0 %v126
    %164 = vmatpush.bf16.msra.mxu0 %v125
    %165 = vmatpush.bf16.msra.mxu0 %v124
    %166 = vmatpush.bf16.msra.mxu0 %v123
    %167 = vmatmul.bf16.gmra.mxu0 %v67
    %v168 = vpop.f32.mrf.mxu0
    %v169 = vadd.f32 %v53, %v168
    %v170 = vpop.f32.mrf.mxu0
    %v171 = vadd.f32 %v53, %v170
    %172 = vmatmul.bf16.gmra.mxu0 %v69
    %v173 = vpop.f32.mrf.mxu0
    %v174 = vadd.f32 %v53, %v173
    %v175 = vpop.f32.mrf.mxu0
    %v176 = vadd.f32 %v53, %v175
    %177 = vdwg.mxu0
    %178 = vmatpush.bf16.msra.mxu0 0
    %179 = vmatpush.bf16.msra.mxu0 0
    %180 = vmatpush.bf16.msra.mxu0 0
    %181 = vmatpush.bf16.msra.mxu0 %v157
    %182 = vmatpush.bf16.msra.mxu0 %v134
    %183 = vmatpush.bf16.msra.mxu0 %v133
    %184 = vmatpush.bf16.msra.mxu0 %v132
    %185 = vmatpush.bf16.msra.mxu0 %v131
    %186 = vmatmul.bf16.gmra.mxu0 %v150
    %v187 = vpop.f32.mrf.mxu0
    %v188 = vadd.f32 %v169, %v187
    %v189 = vpop.f32.mrf.mxu0
    %v190 = vadd.f32 %v171, %v189
    %191 = vmatmul.bf16.gmra.mxu0 %v153
    %v192 = vpop.f32.mrf.mxu0
    %v193 = vadd.f32 %v174, %v192
    %v194 = vpop.f32.mrf.mxu0
    %v195 = vadd.f32 %v176, %v194
    %196 = vdwg.mxu0
    %vm197 = vcmask 261120
    %v198 = vsel %vm197, %v188, 0.0
    %199 = vadd.xlane.f32.xlu0 %v198
    %v200 = vpop.xlane.xlu0 %199
    %v201 = vsel %vm197, %v190, 0.0
    %202 = vadd.xlane.f32.xlu0 %v201
    %v203 = vpop.xlane.xlu0 %202
    %v204 = vsel %vm197, %v193, 0.0
    %205 = vadd.xlane.f32.xlu0 %v204
    %v206 = vpop.xlane.xlu0 %205
    %v207 = vsel %vm197, %v195, 0.0
    %208 = vadd.xlane.f32.xlu0 %v207
    %v209 = vpop.xlane.xlu0 %208
    %v210 = vrcp.pop 32.0
    %v211 = vmul.f32 32.0, %v210
    %v212 = vsub.f32 1.0, %v211
    %v213 = vmul.f32 %v210, %v212
    %v214 = vadd.f32 %v210, %v213
    %vm215 = vweird.f32 %v210
    %v216 = vsel %vm215, %v210, %v214
    %v217 = vmul.f32 %v200, %v216
    %v218 = vmul.f32 %v203, %v216
    %v219 = vmul.f32 %v206, %v216
    %v220 = vmul.f32 %v209, %v216
    %v221 = vsub.f32 %v188, %v217
    %v222 = vsub.f32 %v190, %v218
    %v223 = vsub.f32 %v193, %v219
    %v224 = vsub.f32 %v195, %v220
    %v225 = vmul.f32 %v221, %v221
    %v226 = vmul.f32 %v222, %v222
    %v227 = vmul.f32 %v223, %v223
    %v228 = vmul.f32 %v224, %v224
    %v229 = vsel %vm197, %v225, 0.0
    %230 = vadd.xlane.f32.xlu0 %v229
    %v231 = vpop.xlane.xlu0 %230
    %v232 = vsel %vm197, %v226, 0.0
    %233 = vadd.xlane.f32.xlu0 %v232
    %v234 = vpop.xlane.xlu0 %233
    %v235 = vsel %vm197, %v227, 0.0
    %236 = vadd.xlane.f32.xlu0 %v235
    %v237 = vpop.xlane.xlu0 %236
    %v238 = vsel %vm197, %v228, 0.0
    %239 = vadd.xlane.f32.xlu0 %v238
    %v240 = vpop.xlane.xlu0 %239
    %v241 = vmul.f32 %v231, %v216
    %v242 = vmul.f32 %v234, %v216
    %v243 = vmul.f32 %v237, %v216
    %v244 = vmul.f32 %v240, %v216
    %v245 = vadd.f32 %v241, 1e-05
    %v246 = vadd.f32 %v242, 1e-05
    %v247 = vadd.f32 %v243, 1e-05
    %v248 = vadd.f32 %v244, 1e-05
    %v249 = vrsqrt.pop %v245
    %v250 = vmul.f32 %v249, %v245
    %v251 = vmul.f32 %v250, %v249
    %v252 = vmul.f32 0.5, %v251
    %v253 = vsub.f32 1.5, %v252
    %v254 = vmul.f32 %v249, %v253
    %vm255 = vweird.f32 %v245
    %vm256 = vweird.f32 %v249
    %vm257 = vmor %vm255, %vm256
    %v258 = vsel %vm257, %v249, %v254
    %v259 = vrsqrt.pop %v246
    %v260 = vmul.f32 %v259, %v246
    %v261 = vmul.f32 %v260, %v259
    %v262 = vmul.f32 0.5, %v261
    %v263 = vsub.f32 1.5, %v262
    %v264 = vmul.f32 %v259, %v263
    %vm265 = vweird.f32 %v246
    %vm266 = vweird.f32 %v259
    %vm267 = vmor %vm265, %vm266
    %v268 = vsel %vm267, %v259, %v264
    %v269 = vrsqrt.pop %v247
    %v270 = vmul.f32 %v269, %v247
    %v271 = vmul.f32 %v270, %v269
    %v272 = vmul.f32 0.5, %v271
    %v273 = vsub.f32 1.5, %v272
    %v274 = vmul.f32 %v269, %v273
    %vm275 = vweird.f32 %v247
    %vm276 = vweird.f32 %v269
    %vm277 = vmor %vm275, %vm276
    %v278 = vsel %vm277, %v269, %v274
    %v279 = vrsqrt.pop %v248
    %v280 = vmul.f32 %v279, %v248
    %v281 = vmul.f32 %v280, %v279
    %v282 = vmul.f32 0.5, %v281
    %v283 = vsub.f32 1.5, %v282
    %v284 = vmul.f32 %v279, %v283
    %vm285 = vweird.f32 %v248
    %vm286 = vweird.f32 %v279
    %vm287 = vmor %vm285, %vm286
    %v288 = vsel %vm287, %v279, %v284
    %v289 = vmul.f32 %v221, %v258
    %v290 = vmul.f32 %v222, %v268
    %v291 = vmul.f32 %v223, %v278
    %v292 = vmul.f32 %v224, %v288
    %v293 = vld [vmem:[%s3] sm:$0x1]
    %v295 = vperm.slane %v293, 0
    %v297 = vmul.f32 %v289, %v295
    %v298 = vmul.f32 %v290, %v295
    %v299 = vmul.f32 %v291, %v295
    %v300 = vmul.f32 %v292, %v295
    %v301 = vld [vmem:[%s4] sm:$0x1]
    %v303 = vperm.slane %v301, 0
    %v305 = vadd.f32 %v297, %v303
    %v306 = vadd.f32 %v298, %v303
    %v307 = vadd.f32 %v299, %v303
    %v308 = vadd.f32 %v300, %v303
    %309 = vst.msk [vmem:[#allocation2] sm:$0xff] %vm197, %v305
    %310 = vst.msk [vmem:[#allocation2 + $0x8] sm:$0xff] %vm197, %v306
    %311 = vst.msk [vmem:[#allocation2 + $0x10] sm:$0xff] %vm197, %v307
    %312 = vst.msk [vmem:[#allocation2 + $0x18] sm:$0xff] %vm197, %v308
    // Predicated region
    $region22: #{tpu_custom_call.1} parent=1 // pred_check
      _
    $region23: #{tpu_custom_call.1} parent=1 // pred_check_branch
      %314 = sbr.rel (0) target = $region25
    $region24: #{tpu_custom_call.1} parent=1 // pred_region
      %316 = vsyncadd [#allocation3], 0
      %s317 = sshll.u32 [#allocation2], 4
      %s318 = int_to_ptr.vmem [resolvable:$true] %s317
      %s319 = sshll.u32 %s5, 4
      %s320 = int_to_ptr.hbm [resolvable:$true] %s319
      %325 = dma.vmem_to_hbm [thread:$0]  %s318, 512, %s320, [#allocation3], 128, 128, 8
    $region25: #{tpu_custom_call.1} parent=1 // pred_fallthru
      _
    // Predicated region
    $region26: #{tpu_custom_call.1} parent=1 // pred_check
      _
    $region27: #{tpu_custom_call.1} parent=1 // pred_check_branch
      %327 = sbr.rel (0) target = $region29
    $region28: #{tpu_custom_call.1} parent=1 // pred_region
      %329 = dma.done [#allocation3], 512
    $region29: #{tpu_custom_call.1} parent=1 // pred_fallthru
      _
    %330 = vsyncpa [#allocation3], 1

</llo_original>
